<compile_context>
chip_gen: v7x
topology: tpu7x:2x2x1
jax: 0.10.0
libtpu: 0.0.40
codegen_flags: <defaults>
</compile_context>

<pallas_src>
import jax
import jax.numpy as jnp
from jax.experimental import pallas as pl
from jax.experimental.pallas import tpu as pltpu


_LANE = 128      # feature dims are padded to multiples of the lane width
_SUBLANE = 16    # row-tile alignment (covers f32 (8) and bf16 (16) sublane minima)
# TODO(synk): for int8/fp8 activations the row tile must be a multiple of 32.


def _round_up(v, m):
    return ((v + m - 1) // m) * m


def _make_mlp_kernel(num_layers):
    """Fused MLP kernel body: (x_ref, w0, b0, ..., w{L-1}, b{L-1}, o_ref).

    SiLU after every layer except the last (matches the PyTorch Sequential
    [Linear, SiLU] * (L-1) + [Linear]).
    """

    def kernel(x_ref, *refs):
        out_ref = refs[-1]
        param_refs = refs[:-1]
        h = x_ref[...]                       # native dtype straight into the MXU
        for l in range(num_layers):
            w_ref = param_refs[2 * l]
            b_ref = param_refs[2 * l + 1]    # [1, out_pad]
            acc = jnp.dot(h.astype(w_ref.dtype), w_ref[...],
                          preferred_element_type=jnp.float32)
            acc = acc + b_ref[...].astype(jnp.float32)
            if l < num_layers - 1:
                # SiLU in f32: sigmoid -> EUP slot, mul -> VPU.
                acc = acc * jax.nn.sigmoid(acc)
            h = acc
        out_ref[...] = h.astype(out_ref.dtype)

    return kernel


def mlp_forward(x, params, *, tm=256, single_buffer_weights=True):
    """Fused MLP forward.

    x:      [N, input_dim]
    params: list of (W [in, out], b [out]) per Linear layer, in order.
            (W is the transpose of PyTorch's Linear.weight.)
    """
    if len(params) == 0:
        # num_layers == 0 -> torch.nn.Identity()
        return x

    N, d_in = x.shape
    d_out = params[-1][0].shape[1]
    num_layers = len(params)

    # ---- lane-dense padding of all feature dims to multiples of 128 --------
    d_in_p = _round_up(d_in, _LANE)
    padded_params = []
    prev_p = d_in_p
    for (W, b) in params:
        fi, fo = W.shape
        fo_p = _round_up(fo, _LANE)
        Wp = jnp.pad(W, ((0, prev_p - fi), (0, fo_p - fo)))
        bp = jnp.pad(b.reshape(1, -1), ((0, 0), (0, fo_p - fo)))
        padded_params.append((Wp, bp))
        prev_p = fo_p
    d_out_p = prev_p

    # ---- row tiling: clamp tile to the problem, pad rows to a multiple -----
    tm_eff = _round_up(min(tm, _round_up(N, _SUBLANE)), _SUBLANE)
    n_pad = _round_up(N, tm_eff)
    xp = jnp.pad(x, ((0, n_pad - N), (0, d_in_p - d_in)))

    # ---- explicit VMEM budget (resident weights + activation tiles) --------
    weight_bytes = sum(int(W.size) * W.dtype.itemsize + int(b.size) * b.dtype.itemsize
                       for (W, b) in padded_params)
    max_width = max([d_in_p] + [W.shape[1] for (W, _) in padded_params])
    act_bytes = 8 * tm_eff * max_width * 4      # x/out double-buffers + f32 temps
    vmem_limit = int(min(64 * 2**20,
                         max(32 * 2**20, 2 * weight_bytes + act_bytes + (4 << 20))))
    # TODO(synk): for hidden dims whose padded weights exceed the VMEM budget
    # (e.g. 4096^2 f32), switch to a K/N-tiled inner pipeline
    # (pltpu.emit_pipeline) instead of whole-weight-resident blocks.

    kernel = _make_mlp_kernel(num_layers)
    flat_params = [p for pair in padded_params for p in pair]

    def build(single_buffer):
        def const_spec(shape):
            if single_buffer and hasattr(pl, "Buffered"):
                # Constant-index block: single-buffer so weights cost 1x VMEM.
                return pl.BlockSpec(shape, lambda i: (0, 0),
                                    pipeline_mode=pl.Buffered(1))
            return pl.BlockSpec(shape, lambda i: (0, 0))

        in_specs = [pl.BlockSpec((tm_eff, d_in_p), lambda i: (i, 0))]
        for (W, b) in padded_params:
            in_specs.append(const_spec(W.shape))
            in_specs.append(const_spec(b.shape))
        out_spec = pl.BlockSpec((tm_eff, d_out_p), lambda i: (i, 0))

        return pl.pallas_call(
            kernel,
            out_shape=jax.ShapeDtypeStruct((n_pad, d_out_p), x.dtype),
            grid_spec=pltpu.PrefetchScalarGridSpec(
                num_scalar_prefetch=0,
                grid=(n_pad // tm_eff,),
                in_specs=in_specs,
                out_specs=out_spec,
            ),
            compiler_params=pltpu.CompilerParams(
                dimension_semantics=("parallel",),   # megacore-shard the row axis
                vmem_limit_bytes=vmem_limit,
            ),
        )

    try:
        out = build(single_buffer_weights)(xp, *flat_params)
        out = jax.block_until_ready(out)
    except Exception:
        # Fallback: default (double-buffered) specs if Buffered(1) is rejected.
        out = build(False)(xp, *flat_params)

    return out[:N, :d_out]


def init_mlp_params(key, input_dim, output_dim, hidden_dim, num_layers):
    """Deterministic init mirroring torch.nn.Linear's U(-1/sqrt(fan_in), ...).

    Returns a list of (W [in, out], b [out]) matching the MLP module structure.
    """
    if num_layers == 0:
        return []
    dims = []
    if num_layers == 1:
        dims.append((input_dim, output_dim))
    else:
        prev = input_dim
        for _ in range(num_layers - 1):
            dims.append((prev, hidden_dim))
            prev = hidden_dim
        dims.append((hidden_dim, output_dim))

    params = []
    for (fan_in, fan_out) in dims:
        key, kw, kb = jax.random.split(key, 3)
        bound = 1.0 / jnp.sqrt(jnp.float32(fan_in))
        W = jax.random.uniform(kw, (fan_in, fan_out), jnp.float32, -bound, bound)
        b = jax.random.uniform(kb, (fan_out,), jnp.float32, -bound, bound)
        params.append((W, b))
    return params


def mlp_reference(x, params):
    """Plain-JAX reference of the same forward pass (for validation)."""
    h = x
    for l, (W, b) in enumerate(params):
        h = jnp.dot(h, W, precision=jax.lax.Precision.HIGHEST) + b
        if l < len(params) - 1:
            h = h * jax.nn.sigmoid(h)
    return h


def _check(x, params, rtol=1e-4, atol=1e-4):
    out = jax.block_until_ready(mlp_forward(x, params))
    ref = mlp_reference(x, params)
    assert out.shape == ref.shape, (out.shape, ref.shape)
    assert jnp.allclose(out, ref, rtol=rtol, atol=atol), "mismatch vs reference"
    return out


if __name__ == "__main__":
    key = jax.random.PRNGKey(0)
    kx, kp, kx2, kp2, kp3 = jax.random.split(key, 5)

    # Config A: Linear->SiLU->Linear->SiLU->Linear; small, non-aligned dims.
    # N=40 deliberately not a multiple of the tile to exercise row padding.
    N, input_dim, hidden_dim, output_dim, num_layers = 40, 32, 64, 16, 3
    x = jax.random.normal(kx, (N, input_dim), jnp.float32)
    params = init_mlp_params(kp, input_dim, output_dim, hidden_dim, num_layers)
    _check(x, params)

    # Config B: lane-aligned dims, multi-tile grid (N=300 -> tm=256, grid=2).
    x2 = jax.random.normal(kx2, (300, 128), jnp.float32)
    params2 = init_mlp_params(kp2, 128, 128, 256, 2)
    _check(x2, params2)

    # Config C: num_layers == 1 (single Linear, no SiLU).
    params3 = init_mlp_params(kp3, input_dim, output_dim, hidden_dim, 1)
    _check(x, params3)

    # Config D: num_layers == 0 (Identity).
    out_id = mlp_forward(x, [])
    assert jnp.array_equal(out_id, x)

    # TODO(synk): normalization=None in this config; a LayerNorm callable would
    # be fused here as a per-row mean/var reduction before SiLU.

    print("KERNEL_OK")
</pallas_src>

<mosaic_0001>
module attributes {stable_mosaic.version = 11 : i64} {
  func.func @kernel(%arg0: i32, %arg1: memref<48x128xf32, #tpu.memory_space<vmem>>, %arg2: memref<128x128xf32, #tpu.memory_space<vmem>>, %arg3: memref<1x128xf32, #tpu.memory_space<vmem>>, %arg4: memref<128x128xf32, #tpu.memory_space<vmem>>, %arg5: memref<1x128xf32, #tpu.memory_space<vmem>>, %arg6: memref<128x128xf32, #tpu.memory_space<vmem>>, %arg7: memref<1x128xf32, #tpu.memory_space<vmem>>, %arg8: memref<48x128xf32, #tpu.memory_space<vmem>>) attributes {dimension_semantics = [#tpu.dimension_semantics<parallel>], iteration_bounds = array<i64: 1>, scalar_prefetch = 0 : i64, scratch_operands = 0 : i64, tpu.core_type = #tpu.core_type<tc>, window_params = [{transform_indices = @transform_0, window_bounds = array<i64: 48, 128>}, {pipeline_mode = #tpu.pipeline_mode<synchronous>, transform_indices = @transform_1, window_bounds = array<i64: 128, 128>}, {pipeline_mode = #tpu.pipeline_mode<synchronous>, transform_indices = @transform_2, window_bounds = array<i64: 1, 128>}, {pipeline_mode = #tpu.pipeline_mode<synchronous>, transform_indices = @transform_3, window_bounds = array<i64: 128, 128>}, {pipeline_mode = #tpu.pipeline_mode<synchronous>, transform_indices = @transform_4, window_bounds = array<i64: 1, 128>}, {pipeline_mode = #tpu.pipeline_mode<synchronous>, transform_indices = @transform_5, window_bounds = array<i64: 128, 128>}, {pipeline_mode = #tpu.pipeline_mode<synchronous>, transform_indices = @transform_6, window_bounds = array<i64: 1, 128>}, {transform_indices = @transform_7, window_bounds = array<i64: 48, 128>}]} {
    %c0 = arith.constant 0 : index
    %c0_0 = arith.constant 0 : index
    %0 = vector.load %arg1[%c0, %c0_0] : memref<48x128xf32, #tpu.memory_space<vmem>>, vector<48x128xf32>
    %c0_1 = arith.constant 0 : index
    %c0_2 = arith.constant 0 : index
    %1 = vector.load %arg2[%c0_1, %c0_2] : memref<128x128xf32, #tpu.memory_space<vmem>>, vector<128x128xf32>
    %cst = arith.constant dense<0.000000e+00> : vector<48x128xf32>
    %2 = tpu.matmul %0, %1, %cst {dimension_numbers = #tpu.dot_dimension_numbers<[1], [0], [0], [1], [0, 0, 1, 1], [], []>} : vector<48x128xf32>, vector<128x128xf32>, vector<48x128xf32> -> vector<48x128xf32>
    %c0_3 = arith.constant 0 : index
    %c0_4 = arith.constant 0 : index
    %3 = vector.load %arg3[%c0_3, %c0_4] : memref<1x128xf32, #tpu.memory_space<vmem>>, vector<1x128xf32>
    %4 = vector.broadcast %3 : vector<1x128xf32> to vector<48x128xf32>
    %5 = arith.addf %2, %4 : vector<48x128xf32>
    %6 = arith.negf %5 : vector<48x128xf32>
    %7 = math.exp %6 : vector<48x128xf32>
    %cst_5 = arith.constant 1.000000e+00 : f32
    %8 = vector.broadcast %cst_5 : f32 to vector<48x128xf32>
    %9 = arith.addf %8, %7 : vector<48x128xf32>
    %10 = arith.divf %8, %9 : vector<48x128xf32>
    %11 = arith.mulf %5, %10 : vector<48x128xf32>
    %c0_6 = arith.constant 0 : index
    %c0_7 = arith.constant 0 : index
    %12 = vector.load %arg4[%c0_6, %c0_7] : memref<128x128xf32, #tpu.memory_space<vmem>>, vector<128x128xf32>
    %cst_8 = arith.constant dense<0.000000e+00> : vector<48x128xf32>
    %13 = tpu.matmul %11, %12, %cst_8 {dimension_numbers = #tpu.dot_dimension_numbers<[1], [0], [0], [1], [0, 0, 1, 1], [], []>} : vector<48x128xf32>, vector<128x128xf32>, vector<48x128xf32> -> vector<48x128xf32>
    %c0_9 = arith.constant 0 : index
    %c0_10 = arith.constant 0 : index
    %14 = vector.load %arg5[%c0_9, %c0_10] : memref<1x128xf32, #tpu.memory_space<vmem>>, vector<1x128xf32>
    %15 = vector.broadcast %14 : vector<1x128xf32> to vector<48x128xf32>
    %16 = arith.addf %13, %15 : vector<48x128xf32>
    %17 = arith.negf %16 : vector<48x128xf32>
    %18 = math.exp %17 : vector<48x128xf32>
    %cst_11 = arith.constant 1.000000e+00 : f32
    %19 = vector.broadcast %cst_11 : f32 to vector<48x128xf32>
    %20 = arith.addf %19, %18 : vector<48x128xf32>
    %21 = arith.divf %19, %20 : vector<48x128xf32>
    %22 = arith.mulf %16, %21 : vector<48x128xf32>
    %c0_12 = arith.constant 0 : index
    %c0_13 = arith.constant 0 : index
    %23 = vector.load %arg6[%c0_12, %c0_13] : memref<128x128xf32, #tpu.memory_space<vmem>>, vector<128x128xf32>
    %cst_14 = arith.constant dense<0.000000e+00> : vector<48x128xf32>
    %24 = tpu.matmul %22, %23, %cst_14 {dimension_numbers = #tpu.dot_dimension_numbers<[1], [0], [0], [1], [0, 0, 1, 1], [], []>} : vector<48x128xf32>, vector<128x128xf32>, vector<48x128xf32> -> vector<48x128xf32>
    %c0_15 = arith.constant 0 : index
    %c0_16 = arith.constant 0 : index
    %25 = vector.load %arg7[%c0_15, %c0_16] : memref<1x128xf32, #tpu.memory_space<vmem>>, vector<1x128xf32>
    %26 = vector.broadcast %25 : vector<1x128xf32> to vector<48x128xf32>
    %27 = arith.addf %24, %26 : vector<48x128xf32>
    %c0_17 = arith.constant 0 : index
    %c0_18 = arith.constant 0 : index
    %28 = vector.load %arg8[%c0_17, %c0_18] : memref<48x128xf32, #tpu.memory_space<vmem>>, vector<48x128xf32>
    tpu.vector_store %arg8[%c0_17, %c0_18], %27 {strides = array<i32>} : memref<48x128xf32, #tpu.memory_space<vmem>>, vector<48x128xf32>,
    return
  }
  func.func @transform_0(%arg0: i32) -> (i32, i32) {
    %c0_i32 = arith.constant 0 : i32
    %c0_i32_0 = arith.constant 0 : i32
    return %arg0, %c0_i32 : i32, i32
  }
  func.func @transform_1(%arg0: i32) -> (i32, i32) {
    %c0_i32 = arith.constant 0 : i32
    %c0_i32_0 = arith.constant 0 : i32
    %c0_i32_1 = arith.constant 0 : i32
    return %c0_i32, %c0_i32_0 : i32, i32
  }
  func.func @transform_2(%arg0: i32) -> (i32, i32) {
    %c0_i32 = arith.constant 0 : i32
    %c0_i32_0 = arith.constant 0 : i32
    %c0_i32_1 = arith.constant 0 : i32
    return %c0_i32, %c0_i32_0 : i32, i32
  }
  func.func @transform_3(%arg0: i32) -> (i32, i32) {
    %c0_i32 = arith.constant 0 : i32
    %c0_i32_0 = arith.constant 0 : i32
    %c0_i32_1 = arith.constant 0 : i32
    return %c0_i32, %c0_i32_0 : i32, i32
  }
  func.func @transform_4(%arg0: i32) -> (i32, i32) {
    %c0_i32 = arith.constant 0 : i32
    %c0_i32_0 = arith.constant 0 : i32
    %c0_i32_1 = arith.constant 0 : i32
    return %c0_i32, %c0_i32_0 : i32, i32
  }
  func.func @transform_5(%arg0: i32) -> (i32, i32) {
    %c0_i32 = arith.constant 0 : i32
    %c0_i32_0 = arith.constant 0 : i32
    %c0_i32_1 = arith.constant 0 : i32
    return %c0_i32, %c0_i32_0 : i32, i32
  }
  func.func @transform_6(%arg0: i32) -> (i32, i32) {
    %c0_i32 = arith.constant 0 : i32
    %c0_i32_0 = arith.constant 0 : i32
    %c0_i32_1 = arith.constant 0 : i32
    return %c0_i32, %c0_i32_0 : i32, i32
  }
  func.func @transform_7(%arg0: i32) -> (i32, i32) {
    %c0_i32 = arith.constant 0 : i32
    %c0_i32_0 = arith.constant 0 : i32
    return %arg0, %c0_i32 : i32, i32
  }
}

module attributes {stable_mosaic.version = 11 : i64} {
  func.func @kernel(%arg0: i32, %arg1: memref<48x128xf32, #tpu.memory_space<vmem>>, %arg2: memref<128x128xf32, #tpu.memory_space<vmem>>, %arg3: memref<1x128xf32, #tpu.memory_space<vmem>>, %arg4: memref<128x128xf32, #tpu.memory_space<vmem>>, %arg5: memref<1x128xf32, #tpu.memory_space<vmem>>, %arg6: memref<128x128xf32, #tpu.memory_space<vmem>>, %arg7: memref<1x128xf32, #tpu.memory_space<vmem>>, %arg8: memref<48x128xf32, #tpu.memory_space<vmem>>) attributes {dimension_semantics = [#tpu.dimension_semantics<parallel>], iteration_bounds = array<i64: 1>, scalar_prefetch = 0 : i64, scratch_operands = 0 : i64, tpu.core_type = #tpu.core_type<tc>, window_params = [{transform_indices = @transform_0, window_bounds = array<i64: 48, 128>}, {pipeline_mode = #tpu.pipeline_mode<synchronous>, transform_indices = @transform_1, window_bounds = array<i64: 128, 128>}, {pipeline_mode = #tpu.pipeline_mode<synchronous>, transform_indices = @transform_2, window_bounds = array<i64: 1, 128>}, {pipeline_mode = #tpu.pipeline_mode<synchronous>, transform_indices = @transform_3, window_bounds = array<i64: 128, 128>}, {pipeline_mode = #tpu.pipeline_mode<synchronous>, transform_indices = @transform_4, window_bounds = array<i64: 1, 128>}, {pipeline_mode = #tpu.pipeline_mode<synchronous>, transform_indices = @transform_5, window_bounds = array<i64: 128, 128>}, {pipeline_mode = #tpu.pipeline_mode<synchronous>, transform_indices = @transform_6, window_bounds = array<i64: 1, 128>}, {transform_indices = @transform_7, window_bounds = array<i64: 48, 128>}]} {
    %c0 = arith.constant 0 : index
    %c0_0 = arith.constant 0 : index
    %0 = vector.load %arg1[%c0, %c0_0] : memref<48x128xf32, #tpu.memory_space<vmem>>, vector<48x128xf32>
    %c0_1 = arith.constant 0 : index
    %c0_2 = arith.constant 0 : index
    %1 = vector.load %arg2[%c0_1, %c0_2] : memref<128x128xf32, #tpu.memory_space<vmem>>, vector<128x128xf32>
    %cst = arith.constant dense<0.000000e+00> : vector<48x128xf32>
    %2 = tpu.matmul %0, %1, %cst {dimension_numbers = #tpu.dot_dimension_numbers<[1], [0], [0], [1], [0, 0, 1, 1], [], []>} : vector<48x128xf32>, vector<128x128xf32>, vector<48x128xf32> -> vector<48x128xf32>
    %c0_3 = arith.constant 0 : index
    %c0_4 = arith.constant 0 : index
    %3 = vector.load %arg3[%c0_3, %c0_4] : memref<1x128xf32, #tpu.memory_space<vmem>>, vector<1x128xf32>
    %4 = vector.broadcast %3 : vector<1x128xf32> to vector<48x128xf32>
    %5 = arith.addf %2, %4 : vector<48x128xf32>
    %6 = arith.negf %5 : vector<48x128xf32>
    %7 = math.exp %6 : vector<48x128xf32>
    %cst_5 = arith.constant 1.000000e+00 : f32
    %8 = vector.broadcast %cst_5 : f32 to vector<48x128xf32>
    %9 = arith.addf %8, %7 : vector<48x128xf32>
    %10 = arith.divf %8, %9 : vector<48x128xf32>
    %11 = arith.mulf %5, %10 : vector<48x128xf32>
    %c0_6 = arith.constant 0 : index
    %c0_7 = arith.constant 0 : index
    %12 = vector.load %arg4[%c0_6, %c0_7] : memref<128x128xf32, #tpu.memory_space<vmem>>, vector<128x128xf32>
    %cst_8 = arith.constant dense<0.000000e+00> : vector<48x128xf32>
    %13 = tpu.matmul %11, %12, %cst_8 {dimension_numbers = #tpu.dot_dimension_numbers<[1], [0], [0], [1], [0, 0, 1, 1], [], []>} : vector<48x128xf32>, vector<128x128xf32>, vector<48x128xf32> -> vector<48x128xf32>
    %c0_9 = arith.constant 0 : index
    %c0_10 = arith.constant 0 : index
    %14 = vector.load %arg5[%c0_9, %c0_10] : memref<1x128xf32, #tpu.memory_space<vmem>>, vector<1x128xf32>
    %15 = vector.broadcast %14 : vector<1x128xf32> to vector<48x128xf32>
    %16 = arith.addf %13, %15 : vector<48x128xf32>
    %17 = arith.negf %16 : vector<48x128xf32>
    %18 = math.exp %17 : vector<48x128xf32>
    %cst_11 = arith.constant 1.000000e+00 : f32
    %19 = vector.broadcast %cst_11 : f32 to vector<48x128xf32>
    %20 = arith.addf %19, %18 : vector<48x128xf32>
    %21 = arith.divf %19, %20 : vector<48x128xf32>
    %22 = arith.mulf %16, %21 : vector<48x128xf32>
    %c0_12 = arith.constant 0 : index
    %c0_13 = arith.constant 0 : index
    %23 = vector.load %arg6[%c0_12, %c0_13] : memref<128x128xf32, #tpu.memory_space<vmem>>, vector<128x128xf32>
    %cst_14 = arith.constant dense<0.000000e+00> : vector<48x128xf32>
    %24 = tpu.matmul %22, %23, %cst_14 {dimension_numbers = #tpu.dot_dimension_numbers<[1], [0], [0], [1], [0, 0, 1, 1], [], []>} : vector<48x128xf32>, vector<128x128xf32>, vector<48x128xf32> -> vector<48x128xf32>
    %c0_15 = arith.constant 0 : index
    %c0_16 = arith.constant 0 : index
    %25 = vector.load %arg7[%c0_15, %c0_16] : memref<1x128xf32, #tpu.memory_space<vmem>>, vector<1x128xf32>
    %26 = vector.broadcast %25 : vector<1x128xf32> to vector<48x128xf32>
    %27 = arith.addf %24, %26 : vector<48x128xf32>
    %c0_17 = arith.constant 0 : index
    %c0_18 = arith.constant 0 : index
    %28 = vector.load %arg8[%c0_17, %c0_18] : memref<48x128xf32, #tpu.memory_space<vmem>>, vector<48x128xf32>
    tpu.vector_store %arg8[%c0_17, %c0_18], %27 {strides = array<i32>} : memref<48x128xf32, #tpu.memory_space<vmem>>, vector<48x128xf32>,
    return
  }
  func.func @transform_0(%arg0: i32) -> (i32, i32) {
    %c0_i32 = arith.constant 0 : i32
    %c0_i32_0 = arith.constant 0 : i32
    return %arg0, %c0_i32 : i32, i32
  }
  func.func @transform_1(%arg0: i32) -> (i32, i32) {
    %c0_i32 = arith.constant 0 : i32
    %c0_i32_0 = arith.constant 0 : i32
    %c0_i32_1 = arith.constant 0 : i32
    return %c0_i32, %c0_i32_0 : i32, i32
  }
  func.func @transform_2(%arg0: i32) -> (i32, i32) {
    %c0_i32 = arith.constant 0 : i32
    %c0_i32_0 = arith.constant 0 : i32
    %c0_i32_1 = arith.constant 0 : i32
    return %c0_i32, %c0_i32_0 : i32, i32
  }
  func.func @transform_3(%arg0: i32) -> (i32, i32) {
    %c0_i32 = arith.constant 0 : i32
    %c0_i32_0 = arith.constant 0 : i32
    %c0_i32_1 = arith.constant 0 : i32
    return %c0_i32, %c0_i32_0 : i32, i32
  }
  func.func @transform_4(%arg0: i32) -> (i32, i32) {
    %c0_i32 = arith.constant 0 : i32
    %c0_i32_0 = arith.constant 0 : i32
    %c0_i32_1 = arith.constant 0 : i32
    return %c0_i32, %c0_i32_0 : i32, i32
  }
  func.func @transform_5(%arg0: i32) -> (i32, i32) {
    %c0_i32 = arith.constant 0 : i32
    %c0_i32_0 = arith.constant 0 : i32
    %c0_i32_1 = arith.constant 0 : i32
    return %c0_i32, %c0_i32_0 : i32, i32
  }
  func.func @transform_6(%arg0: i32) -> (i32, i32) {
    %c0_i32 = arith.constant 0 : i32
    %c0_i32_0 = arith.constant 0 : i32
    %c0_i32_1 = arith.constant 0 : i32
    return %c0_i32, %c0_i32_0 : i32, i32
  }
  func.func @transform_7(%arg0: i32) -> (i32, i32) {
    %c0_i32 = arith.constant 0 : i32
    %c0_i32_0 = arith.constant 0 : i32
    return %arg0, %c0_i32 : i32, i32
  }
}

</mosaic_0001>

<llo_original>
// kernel: tpu_custom_call.1
$region0: #{tpu_custom_call.1}
  #allocation0 [shape = 'u32[]', space=smem, size = 0x4, offset = 0x4, fixed_abs, tag = 'smem constant byte address 0x4 - core index']
  #allocation1 [shape = 'u32[144,128]{1,0:T(1,128)}', space=vmem, size = 0x12000, scoped, tag = 'internal scratch']
  %s0 = inlined_call_operand.hbm [shape: f32[48,128], index: 0, kind: input, shape index: {}]
  %s1 = inlined_call_operand.hbm [shape: f32[128,128], index: 1, kind: input, shape index: {}]
  %s2 = inlined_call_operand.vmem [shape: f32[1,128], index: 2, kind: input, shape index: {}]
  %s3 = inlined_call_operand.hbm [shape: f32[128,128], index: 3, kind: input, shape index: {}]
  %s4 = inlined_call_operand.vmem [shape: f32[1,128], index: 4, kind: input, shape index: {}]
  %s5 = inlined_call_operand.hbm [shape: f32[128,128], index: 5, kind: input, shape index: {}]
  %s6 = inlined_call_operand.vmem [shape: f32[1,128], index: 6, kind: input, shape index: {}]
  %s7 = inlined_call_operand.hbm [shape: f32[48,128], index: 7, kind: output, shape index: {}]
  %s8 = sld [smem:[#allocation0]]
  $region54: #{tpu_custom_call.1} parent=0
    _
  %s10 = ssub.s32 1, %s8
  %s11 = scalar_select 0, %s10, %s8
  $region1: #{tpu_custom_call.1} parent=0
    #allocation2 [shape = 'u8[24576]{0}', space=vmem, size = 0x6000, scoped, tag = 'input window, operand 0, single buffered']
    #allocation3 [shape = 's32[1]{0}', space=sflag, size = 0x4, scoped, tag = 'scoped memory for tpu_custom_call.1']
    #allocation4 [shape = 's32[1]{0}', space=sflag, size = 0x4, scoped, tag = 'scoped memory for tpu_custom_call.1']
    #allocation5 [shape = 'u8[65536]{0}', space=vmem, size = 0x10000, scoped, tag = 'input window, operand 1, single buffered']
    #allocation6 [shape = 's32[1]{0}', space=sflag, size = 0x4, scoped, tag = 'scoped memory for tpu_custom_call.1']
    #allocation7 [shape = 'u8[65536]{0}', space=vmem, size = 0x10000, scoped, tag = 'input window, operand 3, single buffered']
    #allocation8 [shape = 'u8[65536]{0}', space=vmem, size = 0x10000, scoped, tag = 'input window, operand 5, single buffered']
    #allocation9 [shape = 's32[1]{0}', space=sflag, size = 0x4, scoped, tag = 'scoped memory for tpu_custom_call.1']
    #allocation10 [shape = 'u8[24576]{0}', space=vmem, size = 0x6000, scoped, tag = 'output window, operand 0, single buffered']
    %12 = vsyncpa [#allocation3], 0
    %13 = vsyncpa [#allocation6], 0
    %14 = vsyncpa [#allocation9], 0
    %15 = vsyncpa [#allocation4], 0
    // Predicated region
    $region2: #{tpu_custom_call.1} parent=1 // pred_check
      _
    $region3: #{tpu_custom_call.1} parent=1 // pred_check_branch
      %17 = sbr.rel (0) target = $region5
    $region4: #{tpu_custom_call.1} parent=1 // pred_region
      %s19 = ssub.s32 768, 768
      %20 = vsyncadd [#allocation3], %s19
      %s21 = sshll.u32 [#allocation2], 4
      %s22 = int_to_ptr.vmem [resolvable:$true] %s21
      %27 = dma.hbm_to_vmem [thread:$0]  %s0, 768, %s22, [#allocation3], 128, 128, 8
    $region5: #{tpu_custom_call.1} parent=1 // pred_fallthru
      _
    // Predicated region
    $region6: #{tpu_custom_call.1} parent=1 // pred_check
      _
    $region7: #{tpu_custom_call.1} parent=1 // pred_check_branch
      %29 = sbr.rel (0) target = $region9
    $region8: #{tpu_custom_call.1} parent=1 // pred_region
      %s31 = ssub.s32 2048, 2048
      %32 = vsyncadd [#allocation6], %s31
      %s33 = sshll.u32 [#allocation5], 4
      %s34 = int_to_ptr.vmem [resolvable:$true] %s33
      %39 = dma.hbm_to_vmem [thread:$0]  %s1, 2048, %s34, [#allocation6], 128, 128, 8
    $region9: #{tpu_custom_call.1} parent=1 // pred_fallthru
      _
    // Predicated region
    $region10: #{tpu_custom_call.1} parent=1 // pred_check
      _
    $region11: #{tpu_custom_call.1} parent=1 // pred_check_branch
      %41 = sbr.rel (0) target = $region13
    $region12: #{tpu_custom_call.1} parent=1 // pred_region
      _
    $region13: #{tpu_custom_call.1} parent=1 // pred_fallthru
      _
    // Predicated region
    $region14: #{tpu_custom_call.1} parent=1 // pred_check
      _
    $region15: #{tpu_custom_call.1} parent=1 // pred_check_branch
      %43 = sbr.rel (0) target = $region17
    $region16: #{tpu_custom_call.1} parent=1 // pred_region
      %s45 = ssub.s32 2048, 2048
      %46 = vsyncadd [#allocation6], %s45
      %s47 = sshll.u32 [#allocation7], 4
      %s48 = int_to_ptr.vmem [resolvable:$true] %s47
      %53 = dma.hbm_to_vmem [thread:$0]  %s3, 2048, %s48, [#allocation6], 128, 128, 8
    $region17: #{tpu_custom_call.1} parent=1 // pred_fallthru
      _
    // Predicated region
    $region18: #{tpu_custom_call.1} parent=1 // pred_check
      _
    $region19: #{tpu_custom_call.1} parent=1 // pred_check_branch
      %55 = sbr.rel (0) target = $region21
    $region20: #{tpu_custom_call.1} parent=1 // pred_region
      _
    $region21: #{tpu_custom_call.1} parent=1 // pred_fallthru
      _
    // Predicated region
    $region22: #{tpu_custom_call.1} parent=1 // pred_check
      _
    $region23: #{tpu_custom_call.1} parent=1 // pred_check_branch
      %57 = sbr.rel (0) target = $region25
    $region24: #{tpu_custom_call.1} parent=1 // pred_region
      %s59 = ssub.s32 2048, 2048
      %60 = vsyncadd [#allocation9], %s59
      %s61 = sshll.u32 [#allocation8], 4
      %s62 = int_to_ptr.vmem [resolvable:$true] %s61
      %67 = dma.hbm_to_vmem [thread:$0]  %s5, 2048, %s62, [#allocation9], 128, 128, 8
    $region25: #{tpu_custom_call.1} parent=1 // pred_fallthru
      _
    // Predicated region
    $region26: #{tpu_custom_call.1} parent=1 // pred_check
      _
    $region27: #{tpu_custom_call.1} parent=1 // pred_check_branch
      %69 = sbr.rel (0) target = $region29
    $region28: #{tpu_custom_call.1} parent=1 // pred_region
      _
    $region29: #{tpu_custom_call.1} parent=1 // pred_fallthru
      _
    // Predicated region
    $region30: #{tpu_custom_call.1} parent=1 // pred_check
      _
    $region31: #{tpu_custom_call.1} parent=1 // pred_check_branch
      %71 = sbr.rel (0) target = $region33
    $region32: #{tpu_custom_call.1} parent=1 // pred_region
      %72 = dma.done [#allocation3], 768
    $region33: #{tpu_custom_call.1} parent=1 // pred_fallthru
      _
    // Predicated region
    $region34: #{tpu_custom_call.1} parent=1 // pred_check
      _
    $region35: #{tpu_custom_call.1} parent=1 // pred_check_branch
      %74 = sbr.rel (0) target = $region37
    $region36: #{tpu_custom_call.1} parent=1 // pred_region
      %75 = dma.done [#allocation6], 2048
    $region37: #{tpu_custom_call.1} parent=1 // pred_fallthru
      _
    // Predicated region
    $region38: #{tpu_custom_call.1} parent=1 // pred_check
      _
    $region39: #{tpu_custom_call.1} parent=1 // pred_check_branch
      %77 = sbr.rel (0) target = $region41
    $region40: #{tpu_custom_call.1} parent=1 // pred_region
      %78 = dma.done [#allocation6], 2048
    $region41: #{tpu_custom_call.1} parent=1 // pred_fallthru
      _
    // Predicated region
    $region42: #{tpu_custom_call.1} parent=1 // pred_check
      _
    $region43: #{tpu_custom_call.1} parent=1 // pred_check_branch
      %80 = sbr.rel (0) target = $region45
    $region44: #{tpu_custom_call.1} parent=1 // pred_region
      %81 = dma.done [#allocation9], 2048
    $region45: #{tpu_custom_call.1} parent=1 // pred_fallthru
      _
    %v82 = vld [vmem:[#allocation2] sm:$0xff]
    %v83 = vld [vmem:[#allocation2 + $0x8] sm:$0xff]
    %v84 = vld [vmem:[#allocation2 + $0x10] sm:$0xff]
    %v85 = vld [vmem:[#allocation2 + $0x18] sm:$0xff]
    %v86 = vld [vmem:[#allocation2 + $0x20] sm:$0xff]
    %v87 = vld [vmem:[#allocation2 + $0x28] sm:$0xff]
    %v88 = vld [vmem:[#allocation5] sm:$0xff]
    %v89 = vld [vmem:[#allocation5 + $0x8] sm:$0xff]
    %v90 = vld [vmem:[#allocation5 + $0x10] sm:$0xff]
    %v91 = vld [vmem:[#allocation5 + $0x18] sm:$0xff]
    %v92 = vld [vmem:[#allocation5 + $0x20] sm:$0xff]
    %v93 = vld [vmem:[#allocation5 + $0x28] sm:$0xff]
    %v94 = vld [vmem:[#allocation5 + $0x30] sm:$0xff]
    %v95 = vld [vmem:[#allocation5 + $0x38] sm:$0xff]
    %v96 = vld [vmem:[#allocation5 + $0x40] sm:$0xff]
    %v97 = vld [vmem:[#allocation5 + $0x48] sm:$0xff]
    %v98 = vld [vmem:[#allocation5 + $0x50] sm:$0xff]
    %v99 = vld [vmem:[#allocation5 + $0x58] sm:$0xff]
    %v100 = vld [vmem:[#allocation5 + $0x60] sm:$0xff]
    %v101 = vld [vmem:[#allocation5 + $0x68] sm:$0xff]
    %v102 = vld [vmem:[#allocation5 + $0x70] sm:$0xff]
    %v103 = vld [vmem:[#allocation5 + $0x78] sm:$0xff]
    %v104 = vld [vmem:[%s2] sm:$0x1]
    %v106 = vlaneseq
    %v107 = vshrl.u32 %v106, 7
    %v108 = vsub.s32 0, %v107
    %v109 = vrot.slane %v104, %v108
    %111 = vmatprep.subr.mxu0 0.0
    %112 = vmatpush1.msra.mxu0 %v88
    %113 = vmatprep.subr.mxu0 0.0
    %114 = vmatpush1.msra.mxu0 %v89
    %115 = vmatprep.subr.mxu0 0.0
    %116 = vmatpush1.msra.mxu0 %v90
    %117 = vmatprep.subr.mxu0 0.0
    %118 = vmatpush1.msra.mxu0 %v91
    %119 = vmatprep.subr.mxu0 0.0
    %120 = vmatpush1.msra.mxu0 %v92
    %121 = vmatprep.subr.mxu0 0.0
    %122 = vmatpush1.msra.mxu0 %v93
    %123 = vmatprep.subr.mxu0 0.0
    %124 = vmatpush1.msra.mxu0 %v94
    %125 = vmatprep.subr.mxu0 0.0
    %126 = vmatpush1.msra.mxu0 %v95
    %127 = vmatprep.subr.mxu0 0.0
    %128 = vmatpush1.msra.mxu0 %v96
    %129 = vmatprep.subr.mxu0 0.0
    %130 = vmatpush1.msra.mxu0 %v97
    %131 = vmatprep.subr.mxu0 0.0
    %132 = vmatpush1.msra.mxu0 %v98
    %133 = vmatprep.subr.mxu0 0.0
    %134 = vmatpush1.msra.mxu0 %v99
    %135 = vmatprep.subr.mxu0 0.0
    %136 = vmatpush1.msra.mxu0 %v100
    %137 = vmatprep.subr.mxu0 0.0
    %138 = vmatpush1.msra.mxu0 %v101
    %139 = vmatprep.subr.mxu0 0.0
    %140 = vmatpush1.msra.mxu0 %v102
    %141 = vmatprep.subr.mxu0 0.0
    %142 = vmatpush1.msra.mxu0 %v103
    %143 = vmatprep.subr.mxu0 0.0
    %144 = vmatpush1.msra.mxu0 0.0
    %145 = vmatprep.subr.mxu0 0.0
    %146 = vmatpush1.msra.mxu0 0.0
    %147 = vmatprep.subr.mxu0 0.0
    %148 = vmatpush1.msra.mxu0 0.0
    %149 = vmatprep.subr.mxu0 0.0
    %150 = vmatpush1.msra.mxu0 0.0
    %151 = vmatprep.subr.mxu0 0.0
    %152 = vmatpush1.msra.mxu0 0.0
    %153 = vmatprep.subr.mxu0 0.0
    %154 = vmatpush1.msra.mxu0 0.0
    %155 = vmatprep.subr.mxu0 0.0
    %156 = vmatpush1.msra.mxu0 0.0
    %157 = vmatprep.subr.mxu0 0.0
    %158 = vmatpush1.msra.mxu0 0.0
    %159 = vmatprep.subr.mxu0 0.0
    %160 = vmatpush1.msra.mxu0 0.0
    %161 = vmatprep.subr.mxu0 0.0
    %162 = vmatpush1.msra.mxu0 0.0
    %163 = vmatprep.subr.mxu0 0.0
    %164 = vmatpush1.msra.mxu0 0.0
    %165 = vmatprep.subr.mxu0 0.0
    %166 = vmatpush1.msra.mxu0 0.0
    %167 = vmatprep.subr.mxu0 0.0
    %168 = vmatpush1.msra.mxu0 0.0
    %169 = vmatprep.subr.mxu0 0.0
    %170 = vmatpush1.msra.mxu0 0.0
    %171 = vmatprep.subr.mxu0 0.0
    %172 = vmatpush1.msra.mxu0 0.0
    %173 = vmatprep.subr.mxu0 0.0
    %174 = vmatpush1.msra.mxu0 0.0
    %175 = vmatprep.mubr.f32.mxu0 0.0
    %176 = vmatmul.mubr.f32.gmra.mrb[0].mxu0 %v82
    %v177 = vpop.f32.mrb[0].mxu0
    %v178 = vadd.f32 %v109, %v177
    %v179 = vpop.f32.mrb[0].mxu0
    %180 = vmatprep.mubr.f32.mxu0 0.0
    %181 = vmatmul.mubr.f32.gmra.mrb[0].mxu0 %v83
    %v182 = vpop.f32.mrb[0].mxu0
    %v183 = vadd.f32 %v109, %v182
    %v184 = vpop.f32.mrb[0].mxu0
    %185 = vmatprep.mubr.f32.mxu0 0.0
    %186 = vmatmul.mubr.f32.gmra.mrb[0].mxu0 %v84
    %v187 = vpop.f32.mrb[0].mxu0
    %v188 = vadd.f32 %v109, %v187
    %v189 = vpop.f32.mrb[0].mxu0
    %190 = vmatprep.mubr.f32.mxu0 0.0
    %191 = vmatmul.mubr.f32.gmra.mrb[0].mxu0 %v85
    %v192 = vpop.f32.mrb[0].mxu0
    %v193 = vadd.f32 %v109, %v192
    %v194 = vpop.f32.mrb[0].mxu0
    %195 = vmatprep.mubr.f32.mxu0 0.0
    %196 = vmatmul.mubr.f32.gmra.mrb[0].mxu0 %v86
    %v197 = vpop.f32.mrb[0].mxu0
    %v198 = vadd.f32 %v109, %v197
    %v199 = vpop.f32.mrb[0].mxu0
    %200 = vmatprep.mubr.f32.mxu0 0.0
    %201 = vmatmul.mubr.f32.gmra.mrb[0].mxu0 %v87
    %v202 = vpop.f32.mrb[0].mxu0
    %v203 = vadd.f32 %v109, %v202
    %v204 = vpop.f32.mrb[0].mxu0
    %205 = vdwg.mxu0
    %v206 = vxor.u32 %v178, 2147483648
    %v207 = vxor.u32 %v183, 2147483648
    %v208 = vxor.u32 %v188, 2147483648
    %v209 = vxor.u32 %v193, 2147483648
    %v210 = vxor.u32 %v198, 2147483648
    %v211 = vxor.u32 %v203, 2147483648
    %v212 = vmul.f32 %v206, 1.442695
    %v213 = vpow.pop %v212
    %v214 = vmul.f32 %v207, 1.442695
    %v215 = vpow.pop %v214
    %v216 = vmul.f32 %v208, 1.442695
    %v217 = vpow.pop %v216
    %v218 = vmul.f32 %v209, 1.442695
    %v219 = vpow.pop %v218
    %v220 = vmul.f32 %v210, 1.442695
    %v221 = vpow.pop %v220
    %v222 = vmul.f32 %v211, 1.442695
    %v223 = vpow.pop %v222
    %v224 = vadd.f32 %v213, 1.0
    %v225 = vadd.f32 %v215, 1.0
    %v226 = vadd.f32 %v217, 1.0
    %v227 = vadd.f32 %v219, 1.0
    %v228 = vadd.f32 %v221, 1.0
    %v229 = vadd.f32 %v223, 1.0
    %v230 = vrcp.pop %v224
    %v231 = vmul.f32 1.0, %v230
    %v232 = vrcp.pop %v225
    %v233 = vmul.f32 1.0, %v232
    %v234 = vrcp.pop %v226
    %v235 = vmul.f32 1.0, %v234
    %v236 = vrcp.pop %v227
    %v237 = vmul.f32 1.0, %v236
    %v238 = vrcp.pop %v228
    %v239 = vmul.f32 1.0, %v238
    %v240 = vrcp.pop %v229
    %v241 = vmul.f32 1.0, %v240
    %v242 = vmul.f32 %v178, %v231
    %v243 = vmul.f32 %v183, %v233
    %v244 = vmul.f32 %v188, %v235
    %v245 = vmul.f32 %v193, %v237
    %v246 = vmul.f32 %v198, %v239
    %v247 = vmul.f32 %v203, %v241
    %v248 = vld [vmem:[#allocation7] sm:$0xff]
    %v249 = vld [vmem:[#allocation7 + $0x8] sm:$0xff]
    %v250 = vld [vmem:[#allocation7 + $0x10] sm:$0xff]
    %v251 = vld [vmem:[#allocation7 + $0x18] sm:$0xff]
    %v252 = vld [vmem:[#allocation7 + $0x20] sm:$0xff]
    %v253 = vld [vmem:[#allocation7 + $0x28] sm:$0xff]
    %v254 = vld [vmem:[#allocation7 + $0x30] sm:$0xff]
    %v255 = vld [vmem:[#allocation7 + $0x38] sm:$0xff]
    %v256 = vld [vmem:[#allocation7 + $0x40] sm:$0xff]
    %v257 = vld [vmem:[#allocation7 + $0x48] sm:$0xff]
    %v258 = vld [vmem:[#allocation7 + $0x50] sm:$0xff]
    %v259 = vld [vmem:[#allocation7 + $0x58] sm:$0xff]
    %v260 = vld [vmem:[#allocation7 + $0x60] sm:$0xff]
    %v261 = vld [vmem:[#allocation7 + $0x68] sm:$0xff]
    %v262 = vld [vmem:[#allocation7 + $0x70] sm:$0xff]
    %v263 = vld [vmem:[#allocation7 + $0x78] sm:$0xff]
    %v264 = vld [vmem:[%s4] sm:$0x1]
    %v266 = vlaneseq
    %v267 = vshrl.u32 %v266, 7
    %v268 = vsub.s32 0, %v267
    %v269 = vrot.slane %v264, %v268
    %271 = vmatprep.subr.mxu0 0.0
    %272 = vmatpush1.msra.mxu0 %v248
    %273 = vmatprep.subr.mxu0 0.0
    %274 = vmatpush1.msra.mxu0 %v249
    %275 = vmatprep.subr.mxu0 0.0
    %276 = vmatpush1.msra.mxu0 %v250
    %277 = vmatprep.subr.mxu0 0.0
    %278 = vmatpush1.msra.mxu0 %v251
    %279 = vmatprep.subr.mxu0 0.0
    %280 = vmatpush1.msra.mxu0 %v252
    %281 = vmatprep.subr.mxu0 0.0
    %282 = vmatpush1.msra.mxu0 %v253
    %283 = vmatprep.subr.mxu0 0.0
    %284 = vmatpush1.msra.mxu0 %v254
    %285 = vmatprep.subr.mxu0 0.0
    %286 = vmatpush1.msra.mxu0 %v255
    %287 = vmatprep.subr.mxu0 0.0
    %288 = vmatpush1.msra.mxu0 %v256
    %289 = vmatprep.subr.mxu0 0.0
    %290 = vmatpush1.msra.mxu0 %v257
    %291 = vmatprep.subr.mxu0 0.0
    %292 = vmatpush1.msra.mxu0 %v258
    %293 = vmatprep.subr.mxu0 0.0
    %294 = vmatpush1.msra.mxu0 %v259
    %295 = vmatprep.subr.mxu0 0.0
    %296 = vmatpush1.msra.mxu0 %v260
    %297 = vmatprep.subr.mxu0 0.0
    %298 = vmatpush1.msra.mxu0 %v261
    %299 = vmatprep.subr.mxu0 0.0
    %300 = vmatpush1.msra.mxu0 %v262
    %301 = vmatprep.subr.mxu0 0.0
    %302 = vmatpush1.msra.mxu0 %v263
    %303 = vmatprep.subr.mxu0 0.0
    %304 = vmatpush1.msra.mxu0 0.0
    %305 = vmatprep.subr.mxu0 0.0
    %306 = vmatpush1.msra.mxu0 0.0
    %307 = vmatprep.subr.mxu0 0.0
    %308 = vmatpush1.msra.mxu0 0.0
    %309 = vmatprep.subr.mxu0 0.0
    %310 = vmatpush1.msra.mxu0 0.0
    %311 = vmatprep.subr.mxu0 0.0
    %312 = vmatpush1.msra.mxu0 0.0
    %313 = vmatprep.subr.mxu0 0.0
    %314 = vmatpush1.msra.mxu0 0.0
    %315 = vmatprep.subr.mxu0 0.0
    %316 = vmatpush1.msra.mxu0 0.0
    %317 = vmatprep.subr.mxu0 0.0
    %318 = vmatpush1.msra.mxu0 0.0
    %319 = vmatprep.subr.mxu0 0.0
    %320 = vmatpush1.msra.mxu0 0.0
    %321 = vmatprep.subr.mxu0 0.0
    %322 = vmatpush1.msra.mxu0 0.0
    %323 = vmatprep.subr.mxu0 0.0
    %324 = vmatpush1.msra.mxu0 0.0
    %325 = vmatprep.subr.mxu0 0.0
    %326 = vmatpush1.msra.mxu0 0.0
    %327 = vmatprep.subr.mxu0 0.0
    %328 = vmatpush1.msra.mxu0 0.0
    %329 = vmatprep.subr.mxu0 0.0
    %330 = vmatpush1.msra.mxu0 0.0
    %331 = vmatprep.subr.mxu0 0.0
    %332 = vmatpush1.msra.mxu0 0.0
    %333 = vmatprep.subr.mxu0 0.0
    %334 = vmatpush1.msra.mxu0 0.0
    %335 = vmatprep.mubr.f32.mxu0 0.0
    %336 = vmatmul.mubr.f32.gmra.mrb[0].mxu0 %v242
    %v337 = vpop.f32.mrb[0].mxu0
    %v338 = vadd.f32 %v269, %v337
    %v339 = vpop.f32.mrb[0].mxu0
    %340 = vmatprep.mubr.f32.mxu0 0.0
    %341 = vmatmul.mubr.f32.gmra.mrb[0].mxu0 %v243
    %v342 = vpop.f32.mrb[0].mxu0
    %v343 = vadd.f32 %v269, %v342
    %v344 = vpop.f32.mrb[0].mxu0
    %345 = vmatprep.mubr.f32.mxu0 0.0
    %346 = vmatmul.mubr.f32.gmra.mrb[0].mxu0 %v244
    %v347 = vpop.f32.mrb[0].mxu0
    %v348 = vadd.f32 %v269, %v347
    %v349 = vpop.f32.mrb[0].mxu0
    %350 = vmatprep.mubr.f32.mxu0 0.0
    %351 = vmatmul.mubr.f32.gmra.mrb[0].mxu0 %v245
    %v352 = vpop.f32.mrb[0].mxu0
    %v353 = vadd.f32 %v269, %v352
    %v354 = vpop.f32.mrb[0].mxu0
    %355 = vmatprep.mubr.f32.mxu0 0.0
    %356 = vmatmul.mubr.f32.gmra.mrb[0].mxu0 %v246
    %v357 = vpop.f32.mrb[0].mxu0
    %v358 = vadd.f32 %v269, %v357
    %v359 = vpop.f32.mrb[0].mxu0
    %360 = vmatprep.mubr.f32.mxu0 0.0
    %361 = vmatmul.mubr.f32.gmra.mrb[0].mxu0 %v247
    %v362 = vpop.f32.mrb[0].mxu0
    %v363 = vadd.f32 %v269, %v362
    %v364 = vpop.f32.mrb[0].mxu0
    %365 = vdwg.mxu0
    %v366 = vxor.u32 %v338, 2147483648
    %v367 = vxor.u32 %v343, 2147483648
    %v368 = vxor.u32 %v348, 2147483648
    %v369 = vxor.u32 %v353, 2147483648
    %v370 = vxor.u32 %v358, 2147483648
    %v371 = vxor.u32 %v363, 2147483648
    %v372 = vmul.f32 %v366, 1.442695
    %v373 = vpow.pop %v372
    %v374 = vmul.f32 %v367, 1.442695
    %v375 = vpow.pop %v374
    %v376 = vmul.f32 %v368, 1.442695
    %v377 = vpow.pop %v376
    %v378 = vmul.f32 %v369, 1.442695
    %v379 = vpow.pop %v378
    %v380 = vmul.f32 %v370, 1.442695
    %v381 = vpow.pop %v380
    %v382 = vmul.f32 %v371, 1.442695
    %v383 = vpow.pop %v382
    %v384 = vadd.f32 %v373, 1.0
    %v385 = vadd.f32 %v375, 1.0
    %v386 = vadd.f32 %v377, 1.0
    %v387 = vadd.f32 %v379, 1.0
    %v388 = vadd.f32 %v381, 1.0
    %v389 = vadd.f32 %v383, 1.0
    %v390 = vrcp.pop %v384
    %v391 = vmul.f32 1.0, %v390
    %v392 = vrcp.pop %v385
    %v393 = vmul.f32 1.0, %v392
    %v394 = vrcp.pop %v386
    %v395 = vmul.f32 1.0, %v394
    %v396 = vrcp.pop %v387
    %v397 = vmul.f32 1.0, %v396
    %v398 = vrcp.pop %v388
    %v399 = vmul.f32 1.0, %v398
    %v400 = vrcp.pop %v389
    %v401 = vmul.f32 1.0, %v400
    %v402 = vmul.f32 %v338, %v391
    %v403 = vmul.f32 %v343, %v393
    %v404 = vmul.f32 %v348, %v395
    %v405 = vmul.f32 %v353, %v397
    %v406 = vmul.f32 %v358, %v399
    %v407 = vmul.f32 %v363, %v401
    %v408 = vld [vmem:[#allocation8] sm:$0xff]
    %v409 = vld [vmem:[#allocation8 + $0x8] sm:$0xff]
    %v410 = vld [vmem:[#allocation8 + $0x10] sm:$0xff]
    %v411 = vld [vmem:[#allocation8 + $0x18] sm:$0xff]
    %v412 = vld [vmem:[#allocation8 + $0x20] sm:$0xff]
    %v413 = vld [vmem:[#allocation8 + $0x28] sm:$0xff]
    %v414 = vld [vmem:[#allocation8 + $0x30] sm:$0xff]
    %v415 = vld [vmem:[#allocation8 + $0x38] sm:$0xff]
    %v416 = vld [vmem:[#allocation8 + $0x40] sm:$0xff]
    %v417 = vld [vmem:[#allocation8 + $0x48] sm:$0xff]
    %v418 = vld [vmem:[#allocation8 + $0x50] sm:$0xff]
    %v419 = vld [vmem:[#allocation8 + $0x58] sm:$0xff]
    %v420 = vld [vmem:[#allocation8 + $0x60] sm:$0xff]
    %v421 = vld [vmem:[#allocation8 + $0x68] sm:$0xff]
    %v422 = vld [vmem:[#allocation8 + $0x70] sm:$0xff]
    %v423 = vld [vmem:[#allocation8 + $0x78] sm:$0xff]
    %v424 = vld [vmem:[%s6] sm:$0x1]
    %v426 = vlaneseq
    %v427 = vshrl.u32 %v426, 7
    %v428 = vsub.s32 0, %v427
    %v429 = vrot.slane %v424, %v428
    %431 = vmatprep.subr.mxu0 0.0
    %432 = vmatpush1.msra.mxu0 %v408
    %433 = vmatprep.subr.mxu0 0.0
    %434 = vmatpush1.msra.mxu0 %v409
    %435 = vmatprep.subr.mxu0 0.0
    %436 = vmatpush1.msra.mxu0 %v410
    %437 = vmatprep.subr.mxu0 0.0
    %438 = vmatpush1.msra.mxu0 %v411
    %439 = vmatprep.subr.mxu0 0.0
    %440 = vmatpush1.msra.mxu0 %v412
    %441 = vmatprep.subr.mxu0 0.0
    %442 = vmatpush1.msra.mxu0 %v413
    %443 = vmatprep.subr.mxu0 0.0
    %444 = vmatpush1.msra.mxu0 %v414
    %445 = vmatprep.subr.mxu0 0.0
    %446 = vmatpush1.msra.mxu0 %v415
    %447 = vmatprep.subr.mxu0 0.0
    %448 = vmatpush1.msra.mxu0 %v416
    %449 = vmatprep.subr.mxu0 0.0
    %450 = vmatpush1.msra.mxu0 %v417
    %451 = vmatprep.subr.mxu0 0.0
    %452 = vmatpush1.msra.mxu0 %v418
    %453 = vmatprep.subr.mxu0 0.0
    %454 = vmatpush1.msra.mxu0 %v419
    %455 = vmatprep.subr.mxu0 0.0
    %456 = vmatpush1.msra.mxu0 %v420
    %457 = vmatprep.subr.mxu0 0.0
    %458 = vmatpush1.msra.mxu0 %v421
    %459 = vmatprep.subr.mxu0 0.0
    %460 = vmatpush1.msra.mxu0 %v422
    %461 = vmatprep.subr.mxu0 0.0
    %462 = vmatpush1.msra.mxu0 %v423
    %463 = vmatprep.subr.mxu0 0.0
    %464 = vmatpush1.msra.mxu0 0.0
    %465 = vmatprep.subr.mxu0 0.0
    %466 = vmatpush1.msra.mxu0 0.0
    %467 = vmatprep.subr.mxu0 0.0
    %468 = vmatpush1.msra.mxu0 0.0
    %469 = vmatprep.subr.mxu0 0.0
    %470 = vmatpush1.msra.mxu0 0.0
    %471 = vmatprep.subr.mxu0 0.0
    %472 = vmatpush1.msra.mxu0 0.0
    %473 = vmatprep.subr.mxu0 0.0
    %474 = vmatpush1.msra.mxu0 0.0
    %475 = vmatprep.subr.mxu0 0.0
    %476 = vmatpush1.msra.mxu0 0.0
    %477 = vmatprep.subr.mxu0 0.0
    %478 = vmatpush1.msra.mxu0 0.0
    %479 = vmatprep.subr.mxu0 0.0
    %480 = vmatpush1.msra.mxu0 0.0
    %481 = vmatprep.subr.mxu0 0.0
    %482 = vmatpush1.msra.mxu0 0.0
    %483 = vmatprep.subr.mxu0 0.0
    %484 = vmatpush1.msra.mxu0 0.0
    %485 = vmatprep.subr.mxu0 0.0
    %486 = vmatpush1.msra.mxu0 0.0
    %487 = vmatprep.subr.mxu0 0.0
    %488 = vmatpush1.msra.mxu0 0.0
    %489 = vmatprep.subr.mxu0 0.0
    %490 = vmatpush1.msra.mxu0 0.0
    %491 = vmatprep.subr.mxu0 0.0
    %492 = vmatpush1.msra.mxu0 0.0
    %493 = vmatprep.subr.mxu0 0.0
    %494 = vmatpush1.msra.mxu0 0.0
    %495 = vmatprep.mubr.f32.mxu0 0.0
    %496 = vmatmul.mubr.f32.gmra.mrb[0].mxu0 %v402
    %v497 = vpop.f32.mrb[0].mxu0
    %v498 = vadd.f32 %v429, %v497
    %v499 = vpop.f32.mrb[0].mxu0
    %500 = vmatprep.mubr.f32.mxu0 0.0
    %501 = vmatmul.mubr.f32.gmra.mrb[0].mxu0 %v403
    %v502 = vpop.f32.mrb[0].mxu0
    %v503 = vadd.f32 %v429, %v502
    %v504 = vpop.f32.mrb[0].mxu0
    %505 = vmatprep.mubr.f32.mxu0 0.0
    %506 = vmatmul.mubr.f32.gmra.mrb[0].mxu0 %v404
    %v507 = vpop.f32.mrb[0].mxu0
    %v508 = vadd.f32 %v429, %v507
    %v509 = vpop.f32.mrb[0].mxu0
    %510 = vmatprep.mubr.f32.mxu0 0.0
    %511 = vmatmul.mubr.f32.gmra.mrb[0].mxu0 %v405
    %v512 = vpop.f32.mrb[0].mxu0
    %v513 = vadd.f32 %v429, %v512
    %v514 = vpop.f32.mrb[0].mxu0
    %515 = vmatprep.mubr.f32.mxu0 0.0
    %516 = vmatmul.mubr.f32.gmra.mrb[0].mxu0 %v406
    %v517 = vpop.f32.mrb[0].mxu0
    %v518 = vadd.f32 %v429, %v517
    %v519 = vpop.f32.mrb[0].mxu0
    %520 = vmatprep.mubr.f32.mxu0 0.0
    %521 = vmatmul.mubr.f32.gmra.mrb[0].mxu0 %v407
    %v522 = vpop.f32.mrb[0].mxu0
    %v523 = vadd.f32 %v429, %v522
    %v524 = vpop.f32.mrb[0].mxu0
    %525 = vdwg.mxu0
    %526 = vst [vmem:[#allocation10] sm:$0xff] %v498
    %527 = vst [vmem:[#allocation10 + $0x8] sm:$0xff] %v503
    %528 = vst [vmem:[#allocation10 + $0x10] sm:$0xff] %v508
    %529 = vst [vmem:[#allocation10 + $0x18] sm:$0xff] %v513
    %530 = vst [vmem:[#allocation10 + $0x20] sm:$0xff] %v518
    %531 = vst [vmem:[#allocation10 + $0x28] sm:$0xff] %v523
    // Predicated region
    $region46: #{tpu_custom_call.1} parent=1 // pred_check
      _
    $region47: #{tpu_custom_call.1} parent=1 // pred_check_branch
      %533 = sbr.rel (0) target = $region49
    $region48: #{tpu_custom_call.1} parent=1 // pred_region
      %s535 = ssub.s32 768, 768
      %536 = vsyncadd [#allocation4], %s535
      %s537 = sshll.u32 [#allocation10], 4
      %s538 = int_to_ptr.vmem [resolvable:$true] %s537
      %543 = dma.vmem_to_hbm [thread:$0]  %s538, 768, %s7, [#allocation4], 128, 128, 8
    $region49: #{tpu_custom_call.1} parent=1 // pred_fallthru
      _
    // Predicated region
    $region50: #{tpu_custom_call.1} parent=1 // pred_check
      _
    $region51: #{tpu_custom_call.1} parent=1 // pred_check_branch
      %545 = sbr.rel (0) target = $region53
    $region52: #{tpu_custom_call.1} parent=1 // pred_region
      %546 = dma.done [#allocation4], 768
    $region53: #{tpu_custom_call.1} parent=1 // pred_fallthru
      _
    %547 = vsyncpa [#allocation3], 1
    %548 = vsyncpa [#allocation6], 1
    %549 = vsyncpa [#allocation9], 1
    %550 = vsyncpa [#allocation4], 1

// kernel: tpu_custom_call.1
$region0: #{tpu_custom_call.1}
  #allocation0 [shape = 'u32[]', space=smem, size = 0x4, offset = 0x4, fixed_abs, tag = 'smem constant byte address 0x4 - core index']
  #allocation1 [shape = 'u32[144,128]{1,0:T(1,128)}', space=vmem, size = 0x12000, scoped, tag = 'internal scratch']
  %s0 = inlined_call_operand.hbm [shape: f32[48,128], index: 0, kind: input, shape index: {}]
  %s1 = inlined_call_operand.hbm [shape: f32[128,128], index: 1, kind: input, shape index: {}]
  %s2 = inlined_call_operand.vmem [shape: f32[1,128], index: 2, kind: input, shape index: {}]
  %s3 = inlined_call_operand.hbm [shape: f32[128,128], index: 3, kind: input, shape index: {}]
  %s4 = inlined_call_operand.vmem [shape: f32[1,128], index: 4, kind: input, shape index: {}]
  %s5 = inlined_call_operand.hbm [shape: f32[128,128], index: 5, kind: input, shape index: {}]
  %s6 = inlined_call_operand.vmem [shape: f32[1,128], index: 6, kind: input, shape index: {}]
  %s7 = inlined_call_operand.hbm [shape: f32[48,128], index: 7, kind: output, shape index: {}]
  %s8 = sld [smem:[#allocation0]]
  $region54: #{tpu_custom_call.1} parent=0
    _
  %s10 = ssub.s32 1, %s8
  %s11 = scalar_select 0, %s10, %s8
  $region1: #{tpu_custom_call.1} parent=0
    #allocation2 [shape = 'u8[24576]{0}', space=vmem, size = 0x6000, scoped, tag = 'input window, operand 0, single buffered']
    #allocation3 [shape = 's32[1]{0}', space=sflag, size = 0x4, scoped, tag = 'scoped memory for tpu_custom_call.1']
    #allocation4 [shape = 's32[1]{0}', space=sflag, size = 0x4, scoped, tag = 'scoped memory for tpu_custom_call.1']
    #allocation5 [shape = 'u8[65536]{0}', space=vmem, size = 0x10000, scoped, tag = 'input window, operand 1, single buffered']
    #allocation6 [shape = 's32[1]{0}', space=sflag, size = 0x4, scoped, tag = 'scoped memory for tpu_custom_call.1']
    #allocation7 [shape = 'u8[65536]{0}', space=vmem, size = 0x10000, scoped, tag = 'input window, operand 3, single buffered']
    #allocation8 [shape = 'u8[65536]{0}', space=vmem, size = 0x10000, scoped, tag = 'input window, operand 5, single buffered']
    #allocation9 [shape = 's32[1]{0}', space=sflag, size = 0x4, scoped, tag = 'scoped memory for tpu_custom_call.1']
    #allocation10 [shape = 'u8[24576]{0}', space=vmem, size = 0x6000, scoped, tag = 'output window, operand 0, single buffered']
    %12 = vsyncpa [#allocation3], 0
    %13 = vsyncpa [#allocation6], 0
    %14 = vsyncpa [#allocation9], 0
    %15 = vsyncpa [#allocation4], 0
    // Predicated region
    $region2: #{tpu_custom_call.1} parent=1 // pred_check
      _
    $region3: #{tpu_custom_call.1} parent=1 // pred_check_branch
      %17 = sbr.rel (0) target = $region5
    $region4: #{tpu_custom_call.1} parent=1 // pred_region
      %s19 = ssub.s32 768, 768
      %20 = vsyncadd [#allocation3], %s19
      %s21 = sshll.u32 [#allocation2], 4
      %s22 = int_to_ptr.vmem [resolvable:$true] %s21
      %27 = dma.hbm_to_vmem [thread:$0]  %s0, 768, %s22, [#allocation3], 128, 128, 8
    $region5: #{tpu_custom_call.1} parent=1 // pred_fallthru
      _
    // Predicated region
    $region6: #{tpu_custom_call.1} parent=1 // pred_check
      _
    $region7: #{tpu_custom_call.1} parent=1 // pred_check_branch
      %29 = sbr.rel (0) target = $region9
    $region8: #{tpu_custom_call.1} parent=1 // pred_region
      %s31 = ssub.s32 2048, 2048
      %32 = vsyncadd [#allocation6], %s31
      %s33 = sshll.u32 [#allocation5], 4
      %s34 = int_to_ptr.vmem [resolvable:$true] %s33
      %39 = dma.hbm_to_vmem [thread:$0]  %s1, 2048, %s34, [#allocation6], 128, 128, 8
    $region9: #{tpu_custom_call.1} parent=1 // pred_fallthru
      _
    // Predicated region
    $region10: #{tpu_custom_call.1} parent=1 // pred_check
      _
    $region11: #{tpu_custom_call.1} parent=1 // pred_check_branch
      %41 = sbr.rel (0) target = $region13
    $region12: #{tpu_custom_call.1} parent=1 // pred_region
      _
    $region13: #{tpu_custom_call.1} parent=1 // pred_fallthru
      _
    // Predicated region
    $region14: #{tpu_custom_call.1} parent=1 // pred_check
      _
    $region15: #{tpu_custom_call.1} parent=1 // pred_check_branch
      %43 = sbr.rel (0) target = $region17
    $region16: #{tpu_custom_call.1} parent=1 // pred_region
      %s45 = ssub.s32 2048, 2048
      %46 = vsyncadd [#allocation6], %s45
      %s47 = sshll.u32 [#allocation7], 4
      %s48 = int_to_ptr.vmem [resolvable:$true] %s47
      %53 = dma.hbm_to_vmem [thread:$0]  %s3, 2048, %s48, [#allocation6], 128, 128, 8
    $region17: #{tpu_custom_call.1} parent=1 // pred_fallthru
      _
    // Predicated region
    $region18: #{tpu_custom_call.1} parent=1 // pred_check
      _
    $region19: #{tpu_custom_call.1} parent=1 // pred_check_branch
      %55 = sbr.rel (0) target = $region21
    $region20: #{tpu_custom_call.1} parent=1 // pred_region
      _
    $region21: #{tpu_custom_call.1} parent=1 // pred_fallthru
      _
    // Predicated region
    $region22: #{tpu_custom_call.1} parent=1 // pred_check
      _
    $region23: #{tpu_custom_call.1} parent=1 // pred_check_branch
      %57 = sbr.rel (0) target = $region25
    $region24: #{tpu_custom_call.1} parent=1 // pred_region
      %s59 = ssub.s32 2048, 2048
      %60 = vsyncadd [#allocation9], %s59
      %s61 = sshll.u32 [#allocation8], 4
      %s62 = int_to_ptr.vmem [resolvable:$true] %s61
      %67 = dma.hbm_to_vmem [thread:$0]  %s5, 2048, %s62, [#allocation9], 128, 128, 8
    $region25: #{tpu_custom_call.1} parent=1 // pred_fallthru
      _
    // Predicated region
    $region26: #{tpu_custom_call.1} parent=1 // pred_check
      _
    $region27: #{tpu_custom_call.1} parent=1 // pred_check_branch
      %69 = sbr.rel (0) target = $region29
    $region28: #{tpu_custom_call.1} parent=1 // pred_region
      _
    $region29: #{tpu_custom_call.1} parent=1 // pred_fallthru
      _
    // Predicated region
    $region30: #{tpu_custom_call.1} parent=1 // pred_check
      _
    $region31: #{tpu_custom_call.1} parent=1 // pred_check_branch
      %71 = sbr.rel (0) target = $region33
    $region32: #{tpu_custom_call.1} parent=1 // pred_region
      %72 = dma.done [#allocation3], 768
    $region33: #{tpu_custom_call.1} parent=1 // pred_fallthru
      _
    // Predicated region
    $region34: #{tpu_custom_call.1} parent=1 // pred_check
      _
    $region35: #{tpu_custom_call.1} parent=1 // pred_check_branch
      %74 = sbr.rel (0) target = $region37
    $region36: #{tpu_custom_call.1} parent=1 // pred_region
      %75 = dma.done [#allocation6], 2048
    $region37: #{tpu_custom_call.1} parent=1 // pred_fallthru
      _
    // Predicated region
    $region38: #{tpu_custom_call.1} parent=1 // pred_check
      _
    $region39: #{tpu_custom_call.1} parent=1 // pred_check_branch
      %77 = sbr.rel (0) target = $region41
    $region40: #{tpu_custom_call.1} parent=1 // pred_region
      %78 = dma.done [#allocation6], 2048
    $region41: #{tpu_custom_call.1} parent=1 // pred_fallthru
      _
    // Predicated region
    $region42: #{tpu_custom_call.1} parent=1 // pred_check
      _
    $region43: #{tpu_custom_call.1} parent=1 // pred_check_branch
      %80 = sbr.rel (0) target = $region45
    $region44: #{tpu_custom_call.1} parent=1 // pred_region
      %81 = dma.done [#allocation9], 2048
    $region45: #{tpu_custom_call.1} parent=1 // pred_fallthru
      _
    %v82 = vld [vmem:[#allocation2] sm:$0xff]
    %v83 = vld [vmem:[#allocation2 + $0x8] sm:$0xff]
    %v84 = vld [vmem:[#allocation2 + $0x10] sm:$0xff]
    %v85 = vld [vmem:[#allocation2 + $0x18] sm:$0xff]
    %v86 = vld [vmem:[#allocation2 + $0x20] sm:$0xff]
    %v87 = vld [vmem:[#allocation2 + $0x28] sm:$0xff]
    %v88 = vld [vmem:[#allocation5] sm:$0xff]
    %v89 = vld [vmem:[#allocation5 + $0x8] sm:$0xff]
    %v90 = vld [vmem:[#allocation5 + $0x10] sm:$0xff]
    %v91 = vld [vmem:[#allocation5 + $0x18] sm:$0xff]
    %v92 = vld [vmem:[#allocation5 + $0x20] sm:$0xff]
    %v93 = vld [vmem:[#allocation5 + $0x28] sm:$0xff]
    %v94 = vld [vmem:[#allocation5 + $0x30] sm:$0xff]
    %v95 = vld [vmem:[#allocation5 + $0x38] sm:$0xff]
    %v96 = vld [vmem:[#allocation5 + $0x40] sm:$0xff]
    %v97 = vld [vmem:[#allocation5 + $0x48] sm:$0xff]
    %v98 = vld [vmem:[#allocation5 + $0x50] sm:$0xff]
    %v99 = vld [vmem:[#allocation5 + $0x58] sm:$0xff]
    %v100 = vld [vmem:[#allocation5 + $0x60] sm:$0xff]
    %v101 = vld [vmem:[#allocation5 + $0x68] sm:$0xff]
    %v102 = vld [vmem:[#allocation5 + $0x70] sm:$0xff]
    %v103 = vld [vmem:[#allocation5 + $0x78] sm:$0xff]
    %v104 = vld [vmem:[%s2] sm:$0x1]
    %v106 = vlaneseq
    %v107 = vshrl.u32 %v106, 7
    %v108 = vsub.s32 0, %v107
    %v109 = vrot.slane %v104, %v108
    %111 = vmatprep.subr.mxu0 0.0
    %112 = vmatpush1.msra.mxu0 %v88
    %113 = vmatprep.subr.mxu0 0.0
    %114 = vmatpush1.msra.mxu0 %v89
    %115 = vmatprep.subr.mxu0 0.0
    %116 = vmatpush1.msra.mxu0 %v90
    %117 = vmatprep.subr.mxu0 0.0
    %118 = vmatpush1.msra.mxu0 %v91
    %119 = vmatprep.subr.mxu0 0.0
    %120 = vmatpush1.msra.mxu0 %v92
    %121 = vmatprep.subr.mxu0 0.0
    %122 = vmatpush1.msra.mxu0 %v93
    %123 = vmatprep.subr.mxu0 0.0
    %124 = vmatpush1.msra.mxu0 %v94
    %125 = vmatprep.subr.mxu0 0.0
    %126 = vmatpush1.msra.mxu0 %v95
    %127 = vmatprep.subr.mxu0 0.0
    %128 = vmatpush1.msra.mxu0 %v96
    %129 = vmatprep.subr.mxu0 0.0
    %130 = vmatpush1.msra.mxu0 %v97
    %131 = vmatprep.subr.mxu0 0.0
    %132 = vmatpush1.msra.mxu0 %v98
    %133 = vmatprep.subr.mxu0 0.0
    %134 = vmatpush1.msra.mxu0 %v99
    %135 = vmatprep.subr.mxu0 0.0
    %136 = vmatpush1.msra.mxu0 %v100
    %137 = vmatprep.subr.mxu0 0.0
    %138 = vmatpush1.msra.mxu0 %v101
    %139 = vmatprep.subr.mxu0 0.0
    %140 = vmatpush1.msra.mxu0 %v102
    %141 = vmatprep.subr.mxu0 0.0
    %142 = vmatpush1.msra.mxu0 %v103
    %143 = vmatprep.subr.mxu0 0.0
    %144 = vmatpush1.msra.mxu0 0.0
    %145 = vmatprep.subr.mxu0 0.0
    %146 = vmatpush1.msra.mxu0 0.0
    %147 = vmatprep.subr.mxu0 0.0
    %148 = vmatpush1.msra.mxu0 0.0
    %149 = vmatprep.subr.mxu0 0.0
    %150 = vmatpush1.msra.mxu0 0.0
    %151 = vmatprep.subr.mxu0 0.0
    %152 = vmatpush1.msra.mxu0 0.0
    %153 = vmatprep.subr.mxu0 0.0
    %154 = vmatpush1.msra.mxu0 0.0
    %155 = vmatprep.subr.mxu0 0.0
    %156 = vmatpush1.msra.mxu0 0.0
    %157 = vmatprep.subr.mxu0 0.0
    %158 = vmatpush1.msra.mxu0 0.0
    %159 = vmatprep.subr.mxu0 0.0
    %160 = vmatpush1.msra.mxu0 0.0
    %161 = vmatprep.subr.mxu0 0.0
    %162 = vmatpush1.msra.mxu0 0.0
    %163 = vmatprep.subr.mxu0 0.0
    %164 = vmatpush1.msra.mxu0 0.0
    %165 = vmatprep.subr.mxu0 0.0
    %166 = vmatpush1.msra.mxu0 0.0
    %167 = vmatprep.subr.mxu0 0.0
    %168 = vmatpush1.msra.mxu0 0.0
    %169 = vmatprep.subr.mxu0 0.0
    %170 = vmatpush1.msra.mxu0 0.0
    %171 = vmatprep.subr.mxu0 0.0
    %172 = vmatpush1.msra.mxu0 0.0
    %173 = vmatprep.subr.mxu0 0.0
    %174 = vmatpush1.msra.mxu0 0.0
    %175 = vmatprep.mubr.f32.mxu0 0.0
    %176 = vmatmul.mubr.f32.gmra.mrb[0].mxu0 %v82
    %v177 = vpop.f32.mrb[0].mxu0
    %v178 = vadd.f32 %v109, %v177
    %v179 = vpop.f32.mrb[0].mxu0
    %180 = vmatprep.mubr.f32.mxu0 0.0
    %181 = vmatmul.mubr.f32.gmra.mrb[0].mxu0 %v83
    %v182 = vpop.f32.mrb[0].mxu0
    %v183 = vadd.f32 %v109, %v182
    %v184 = vpop.f32.mrb[0].mxu0
    %185 = vmatprep.mubr.f32.mxu0 0.0
    %186 = vmatmul.mubr.f32.gmra.mrb[0].mxu0 %v84
    %v187 = vpop.f32.mrb[0].mxu0
    %v188 = vadd.f32 %v109, %v187
    %v189 = vpop.f32.mrb[0].mxu0
    %190 = vmatprep.mubr.f32.mxu0 0.0
    %191 = vmatmul.mubr.f32.gmra.mrb[0].mxu0 %v85
    %v192 = vpop.f32.mrb[0].mxu0
    %v193 = vadd.f32 %v109, %v192
    %v194 = vpop.f32.mrb[0].mxu0
    %195 = vmatprep.mubr.f32.mxu0 0.0
    %196 = vmatmul.mubr.f32.gmra.mrb[0].mxu0 %v86
    %v197 = vpop.f32.mrb[0].mxu0
    %v198 = vadd.f32 %v109, %v197
    %v199 = vpop.f32.mrb[0].mxu0
    %200 = vmatprep.mubr.f32.mxu0 0.0
    %201 = vmatmul.mubr.f32.gmra.mrb[0].mxu0 %v87
    %v202 = vpop.f32.mrb[0].mxu0
    %v203 = vadd.f32 %v109, %v202
    %v204 = vpop.f32.mrb[0].mxu0
    %205 = vdwg.mxu0
    %v206 = vxor.u32 %v178, 2147483648
    %v207 = vxor.u32 %v183, 2147483648
    %v208 = vxor.u32 %v188, 2147483648
    %v209 = vxor.u32 %v193, 2147483648
    %v210 = vxor.u32 %v198, 2147483648
    %v211 = vxor.u32 %v203, 2147483648
    %v212 = vmul.f32 %v206, 1.442695
    %v213 = vpow.pop %v212
    %v214 = vmul.f32 %v207, 1.442695
    %v215 = vpow.pop %v214
    %v216 = vmul.f32 %v208, 1.442695
    %v217 = vpow.pop %v216
    %v218 = vmul.f32 %v209, 1.442695
    %v219 = vpow.pop %v218
    %v220 = vmul.f32 %v210, 1.442695
    %v221 = vpow.pop %v220
    %v222 = vmul.f32 %v211, 1.442695
    %v223 = vpow.pop %v222
    %v224 = vadd.f32 %v213, 1.0
    %v225 = vadd.f32 %v215, 1.0
    %v226 = vadd.f32 %v217, 1.0
    %v227 = vadd.f32 %v219, 1.0
    %v228 = vadd.f32 %v221, 1.0
    %v229 = vadd.f32 %v223, 1.0
    %v230 = vrcp.pop %v224
    %v231 = vmul.f32 1.0, %v230
    %v232 = vrcp.pop %v225
    %v233 = vmul.f32 1.0, %v232
    %v234 = vrcp.pop %v226
    %v235 = vmul.f32 1.0, %v234
    %v236 = vrcp.pop %v227
    %v237 = vmul.f32 1.0, %v236
    %v238 = vrcp.pop %v228
    %v239 = vmul.f32 1.0, %v238
    %v240 = vrcp.pop %v229
    %v241 = vmul.f32 1.0, %v240
    %v242 = vmul.f32 %v178, %v231
    %v243 = vmul.f32 %v183, %v233
    %v244 = vmul.f32 %v188, %v235
    %v245 = vmul.f32 %v193, %v237
    %v246 = vmul.f32 %v198, %v239
    %v247 = vmul.f32 %v203, %v241
    %v248 = vld [vmem:[#allocation7] sm:$0xff]
    %v249 = vld [vmem:[#allocation7 + $0x8] sm:$0xff]
    %v250 = vld [vmem:[#allocation7 + $0x10] sm:$0xff]
    %v251 = vld [vmem:[#allocation7 + $0x18] sm:$0xff]
    %v252 = vld [vmem:[#allocation7 + $0x20] sm:$0xff]
    %v253 = vld [vmem:[#allocation7 + $0x28] sm:$0xff]
    %v254 = vld [vmem:[#allocation7 + $0x30] sm:$0xff]
    %v255 = vld [vmem:[#allocation7 + $0x38] sm:$0xff]
    %v256 = vld [vmem:[#allocation7 + $0x40] sm:$0xff]
    %v257 = vld [vmem:[#allocation7 + $0x48] sm:$0xff]
    %v258 = vld [vmem:[#allocation7 + $0x50] sm:$0xff]
    %v259 = vld [vmem:[#allocation7 + $0x58] sm:$0xff]
    %v260 = vld [vmem:[#allocation7 + $0x60] sm:$0xff]
    %v261 = vld [vmem:[#allocation7 + $0x68] sm:$0xff]
    %v262 = vld [vmem:[#allocation7 + $0x70] sm:$0xff]
    %v263 = vld [vmem:[#allocation7 + $0x78] sm:$0xff]
    %v264 = vld [vmem:[%s4] sm:$0x1]
    %v266 = vlaneseq
    %v267 = vshrl.u32 %v266, 7
    %v268 = vsub.s32 0, %v267
    %v269 = vrot.slane %v264, %v268
    %271 = vmatprep.subr.mxu0 0.0
    %272 = vmatpush1.msra.mxu0 %v248
    %273 = vmatprep.subr.mxu0 0.0
    %274 = vmatpush1.msra.mxu0 %v249
    %275 = vmatprep.subr.mxu0 0.0
    %276 = vmatpush1.msra.mxu0 %v250
    %277 = vmatprep.subr.mxu0 0.0
    %278 = vmatpush1.msra.mxu0 %v251
    %279 = vmatprep.subr.mxu0 0.0
    %280 = vmatpush1.msra.mxu0 %v252
    %281 = vmatprep.subr.mxu0 0.0
    %282 = vmatpush1.msra.mxu0 %v253
    %283 = vmatprep.subr.mxu0 0.0
    %284 = vmatpush1.msra.mxu0 %v254
    %285 = vmatprep.subr.mxu0 0.0
    %286 = vmatpush1.msra.mxu0 %v255
    %287 = vmatprep.subr.mxu0 0.0
    %288 = vmatpush1.msra.mxu0 %v256
    %289 = vmatprep.subr.mxu0 0.0
    %290 = vmatpush1.msra.mxu0 %v257
    %291 = vmatprep.subr.mxu0 0.0
    %292 = vmatpush1.msra.mxu0 %v258
    %293 = vmatprep.subr.mxu0 0.0
    %294 = vmatpush1.msra.mxu0 %v259
    %295 = vmatprep.subr.mxu0 0.0
    %296 = vmatpush1.msra.mxu0 %v260
    %297 = vmatprep.subr.mxu0 0.0
    %298 = vmatpush1.msra.mxu0 %v261
    %299 = vmatprep.subr.mxu0 0.0
    %300 = vmatpush1.msra.mxu0 %v262
    %301 = vmatprep.subr.mxu0 0.0
    %302 = vmatpush1.msra.mxu0 %v263
    %303 = vmatprep.subr.mxu0 0.0
    %304 = vmatpush1.msra.mxu0 0.0
    %305 = vmatprep.subr.mxu0 0.0
    %306 = vmatpush1.msra.mxu0 0.0
    %307 = vmatprep.subr.mxu0 0.0
    %308 = vmatpush1.msra.mxu0 0.0
    %309 = vmatprep.subr.mxu0 0.0
    %310 = vmatpush1.msra.mxu0 0.0
    %311 = vmatprep.subr.mxu0 0.0
    %312 = vmatpush1.msra.mxu0 0.0
    %313 = vmatprep.subr.mxu0 0.0
    %314 = vmatpush1.msra.mxu0 0.0
    %315 = vmatprep.subr.mxu0 0.0
    %316 = vmatpush1.msra.mxu0 0.0
    %317 = vmatprep.subr.mxu0 0.0
    %318 = vmatpush1.msra.mxu0 0.0
    %319 = vmatprep.subr.mxu0 0.0
    %320 = vmatpush1.msra.mxu0 0.0
    %321 = vmatprep.subr.mxu0 0.0
    %322 = vmatpush1.msra.mxu0 0.0
    %323 = vmatprep.subr.mxu0 0.0
    %324 = vmatpush1.msra.mxu0 0.0
    %325 = vmatprep.subr.mxu0 0.0
    %326 = vmatpush1.msra.mxu0 0.0
    %327 = vmatprep.subr.mxu0 0.0
    %328 = vmatpush1.msra.mxu0 0.0
    %329 = vmatprep.subr.mxu0 0.0
    %330 = vmatpush1.msra.mxu0 0.0
    %331 = vmatprep.subr.mxu0 0.0
    %332 = vmatpush1.msra.mxu0 0.0
    %333 = vmatprep.subr.mxu0 0.0
    %334 = vmatpush1.msra.mxu0 0.0
    %335 = vmatprep.mubr.f32.mxu0 0.0
    %336 = vmatmul.mubr.f32.gmra.mrb[0].mxu0 %v242
    %v337 = vpop.f32.mrb[0].mxu0
    %v338 = vadd.f32 %v269, %v337
    %v339 = vpop.f32.mrb[0].mxu0
    %340 = vmatprep.mubr.f32.mxu0 0.0
    %341 = vmatmul.mubr.f32.gmra.mrb[0].mxu0 %v243
    %v342 = vpop.f32.mrb[0].mxu0
    %v343 = vadd.f32 %v269, %v342
    %v344 = vpop.f32.mrb[0].mxu0
    %345 = vmatprep.mubr.f32.mxu0 0.0
    %346 = vmatmul.mubr.f32.gmra.mrb[0].mxu0 %v244
    %v347 = vpop.f32.mrb[0].mxu0
    %v348 = vadd.f32 %v269, %v347
    %v349 = vpop.f32.mrb[0].mxu0
    %350 = vmatprep.mubr.f32.mxu0 0.0
    %351 = vmatmul.mubr.f32.gmra.mrb[0].mxu0 %v245
    %v352 = vpop.f32.mrb[0].mxu0
    %v353 = vadd.f32 %v269, %v352
    %v354 = vpop.f32.mrb[0].mxu0
    %355 = vmatprep.mubr.f32.mxu0 0.0
    %356 = vmatmul.mubr.f32.gmra.mrb[0].mxu0 %v246
    %v357 = vpop.f32.mrb[0].mxu0
    %v358 = vadd.f32 %v269, %v357
    %v359 = vpop.f32.mrb[0].mxu0
    %360 = vmatprep.mubr.f32.mxu0 0.0
    %361 = vmatmul.mubr.f32.gmra.mrb[0].mxu0 %v247
    %v362 = vpop.f32.mrb[0].mxu0
    %v363 = vadd.f32 %v269, %v362
    %v364 = vpop.f32.mrb[0].mxu0
    %365 = vdwg.mxu0
    %v366 = vxor.u32 %v338, 2147483648
    %v367 = vxor.u32 %v343, 2147483648
    %v368 = vxor.u32 %v348, 2147483648
    %v369 = vxor.u32 %v353, 2147483648
    %v370 = vxor.u32 %v358, 2147483648
    %v371 = vxor.u32 %v363, 2147483648
    %v372 = vmul.f32 %v366, 1.442695
    %v373 = vpow.pop %v372
    %v374 = vmul.f32 %v367, 1.442695
    %v375 = vpow.pop %v374
    %v376 = vmul.f32 %v368, 1.442695
    %v377 = vpow.pop %v376
    %v378 = vmul.f32 %v369, 1.442695
    %v379 = vpow.pop %v378
    %v380 = vmul.f32 %v370, 1.442695
    %v381 = vpow.pop %v380
    %v382 = vmul.f32 %v371, 1.442695
    %v383 = vpow.pop %v382
    %v384 = vadd.f32 %v373, 1.0
    %v385 = vadd.f32 %v375, 1.0
    %v386 = vadd.f32 %v377, 1.0
    %v387 = vadd.f32 %v379, 1.0
    %v388 = vadd.f32 %v381, 1.0
    %v389 = vadd.f32 %v383, 1.0
    %v390 = vrcp.pop %v384
    %v391 = vmul.f32 1.0, %v390
    %v392 = vrcp.pop %v385
    %v393 = vmul.f32 1.0, %v392
    %v394 = vrcp.pop %v386
    %v395 = vmul.f32 1.0, %v394
    %v396 = vrcp.pop %v387
    %v397 = vmul.f32 1.0, %v396
    %v398 = vrcp.pop %v388
    %v399 = vmul.f32 1.0, %v398
    %v400 = vrcp.pop %v389
    %v401 = vmul.f32 1.0, %v400
    %v402 = vmul.f32 %v338, %v391
    %v403 = vmul.f32 %v343, %v393
    %v404 = vmul.f32 %v348, %v395
    %v405 = vmul.f32 %v353, %v397
    %v406 = vmul.f32 %v358, %v399
    %v407 = vmul.f32 %v363, %v401
    %v408 = vld [vmem:[#allocation8] sm:$0xff]
    %v409 = vld [vmem:[#allocation8 + $0x8] sm:$0xff]
    %v410 = vld [vmem:[#allocation8 + $0x10] sm:$0xff]
    %v411 = vld [vmem:[#allocation8 + $0x18] sm:$0xff]
    %v412 = vld [vmem:[#allocation8 + $0x20] sm:$0xff]
    %v413 = vld [vmem:[#allocation8 + $0x28] sm:$0xff]
    %v414 = vld [vmem:[#allocation8 + $0x30] sm:$0xff]
    %v415 = vld [vmem:[#allocation8 + $0x38] sm:$0xff]
    %v416 = vld [vmem:[#allocation8 + $0x40] sm:$0xff]
    %v417 = vld [vmem:[#allocation8 + $0x48] sm:$0xff]
    %v418 = vld [vmem:[#allocation8 + $0x50] sm:$0xff]
    %v419 = vld [vmem:[#allocation8 + $0x58] sm:$0xff]
    %v420 = vld [vmem:[#allocation8 + $0x60] sm:$0xff]
    %v421 = vld [vmem:[#allocation8 + $0x68] sm:$0xff]
    %v422 = vld [vmem:[#allocation8 + $0x70] sm:$0xff]
    %v423 = vld [vmem:[#allocation8 + $0x78] sm:$0xff]
    %v424 = vld [vmem:[%s6] sm:$0x1]
    %v426 = vlaneseq
    %v427 = vshrl.u32 %v426, 7
    %v428 = vsub.s32 0, %v427
    %v429 = vrot.slane %v424, %v428
    %431 = vmatprep.subr.mxu0 0.0
    %432 = vmatpush1.msra.mxu0 %v408
    %433 = vmatprep.subr.mxu0 0.0
    %434 = vmatpush1.msra.mxu0 %v409
    %435 = vmatprep.subr.mxu0 0.0
    %436 = vmatpush1.msra.mxu0 %v410
    %437 = vmatprep.subr.mxu0 0.0
    %438 = vmatpush1.msra.mxu0 %v411
    %439 = vmatprep.subr.mxu0 0.0
    %440 = vmatpush1.msra.mxu0 %v412
    %441 = vmatprep.subr.mxu0 0.0
    %442 = vmatpush1.msra.mxu0 %v413
    %443 = vmatprep.subr.mxu0 0.0
    %444 = vmatpush1.msra.mxu0 %v414
    %445 = vmatprep.subr.mxu0 0.0
    %446 = vmatpush1.msra.mxu0 %v415
    %447 = vmatprep.subr.mxu0 0.0
    %448 = vmatpush1.msra.mxu0 %v416
    %449 = vmatprep.subr.mxu0 0.0
    %450 = vmatpush1.msra.mxu0 %v417
    %451 = vmatprep.subr.mxu0 0.0
    %452 = vmatpush1.msra.mxu0 %v418
    %453 = vmatprep.subr.mxu0 0.0
    %454 = vmatpush1.msra.mxu0 %v419
    %455 = vmatprep.subr.mxu0 0.0
    %456 = vmatpush1.msra.mxu0 %v420
    %457 = vmatprep.subr.mxu0 0.0
    %458 = vmatpush1.msra.mxu0 %v421
    %459 = vmatprep.subr.mxu0 0.0
    %460 = vmatpush1.msra.mxu0 %v422
    %461 = vmatprep.subr.mxu0 0.0
    %462 = vmatpush1.msra.mxu0 %v423
    %463 = vmatprep.subr.mxu0 0.0
    %464 = vmatpush1.msra.mxu0 0.0
    %465 = vmatprep.subr.mxu0 0.0
    %466 = vmatpush1.msra.mxu0 0.0
    %467 = vmatprep.subr.mxu0 0.0
    %468 = vmatpush1.msra.mxu0 0.0
    %469 = vmatprep.subr.mxu0 0.0
    %470 = vmatpush1.msra.mxu0 0.0
    %471 = vmatprep.subr.mxu0 0.0
    %472 = vmatpush1.msra.mxu0 0.0
    %473 = vmatprep.subr.mxu0 0.0
    %474 = vmatpush1.msra.mxu0 0.0
    %475 = vmatprep.subr.mxu0 0.0
    %476 = vmatpush1.msra.mxu0 0.0
    %477 = vmatprep.subr.mxu0 0.0
    %478 = vmatpush1.msra.mxu0 0.0
    %479 = vmatprep.subr.mxu0 0.0
    %480 = vmatpush1.msra.mxu0 0.0
    %481 = vmatprep.subr.mxu0 0.0
    %482 = vmatpush1.msra.mxu0 0.0
    %483 = vmatprep.subr.mxu0 0.0
    %484 = vmatpush1.msra.mxu0 0.0
    %485 = vmatprep.subr.mxu0 0.0
    %486 = vmatpush1.msra.mxu0 0.0
    %487 = vmatprep.subr.mxu0 0.0
    %488 = vmatpush1.msra.mxu0 0.0
    %489 = vmatprep.subr.mxu0 0.0
    %490 = vmatpush1.msra.mxu0 0.0
    %491 = vmatprep.subr.mxu0 0.0
    %492 = vmatpush1.msra.mxu0 0.0
    %493 = vmatprep.subr.mxu0 0.0
    %494 = vmatpush1.msra.mxu0 0.0
    %495 = vmatprep.mubr.f32.mxu0 0.0
    %496 = vmatmul.mubr.f32.gmra.mrb[0].mxu0 %v402
    %v497 = vpop.f32.mrb[0].mxu0
    %v498 = vadd.f32 %v429, %v497
    %v499 = vpop.f32.mrb[0].mxu0
    %500 = vmatprep.mubr.f32.mxu0 0.0
    %501 = vmatmul.mubr.f32.gmra.mrb[0].mxu0 %v403
    %v502 = vpop.f32.mrb[0].mxu0
    %v503 = vadd.f32 %v429, %v502
    %v504 = vpop.f32.mrb[0].mxu0
    %505 = vmatprep.mubr.f32.mxu0 0.0
    %506 = vmatmul.mubr.f32.gmra.mrb[0].mxu0 %v404
    %v507 = vpop.f32.mrb[0].mxu0
    %v508 = vadd.f32 %v429, %v507
    %v509 = vpop.f32.mrb[0].mxu0
    %510 = vmatprep.mubr.f32.mxu0 0.0
    %511 = vmatmul.mubr.f32.gmra.mrb[0].mxu0 %v405
    %v512 = vpop.f32.mrb[0].mxu0
    %v513 = vadd.f32 %v429, %v512
    %v514 = vpop.f32.mrb[0].mxu0
    %515 = vmatprep.mubr.f32.mxu0 0.0
    %516 = vmatmul.mubr.f32.gmra.mrb[0].mxu0 %v406
    %v517 = vpop.f32.mrb[0].mxu0
    %v518 = vadd.f32 %v429, %v517
    %v519 = vpop.f32.mrb[0].mxu0
    %520 = vmatprep.mubr.f32.mxu0 0.0
    %521 = vmatmul.mubr.f32.gmra.mrb[0].mxu0 %v407
    %v522 = vpop.f32.mrb[0].mxu0
    %v523 = vadd.f32 %v429, %v522
    %v524 = vpop.f32.mrb[0].mxu0
    %525 = vdwg.mxu0
    %526 = vst [vmem:[#allocation10] sm:$0xff] %v498
    %527 = vst [vmem:[#allocation10 + $0x8] sm:$0xff] %v503
    %528 = vst [vmem:[#allocation10 + $0x10] sm:$0xff] %v508
    %529 = vst [vmem:[#allocation10 + $0x18] sm:$0xff] %v513
    %530 = vst [vmem:[#allocation10 + $0x20] sm:$0xff] %v518
    %531 = vst [vmem:[#allocation10 + $0x28] sm:$0xff] %v523
    // Predicated region
    $region46: #{tpu_custom_call.1} parent=1 // pred_check
      _
    $region47: #{tpu_custom_call.1} parent=1 // pred_check_branch
      %533 = sbr.rel (0) target = $region49
    $region48: #{tpu_custom_call.1} parent=1 // pred_region
      %s535 = ssub.s32 768, 768
      %536 = vsyncadd [#allocation4], %s535
      %s537 = sshll.u32 [#allocation10], 4
      %s538 = int_to_ptr.vmem [resolvable:$true] %s537
      %543 = dma.vmem_to_hbm [thread:$0]  %s538, 768, %s7, [#allocation4], 128, 128, 8
    $region49: #{tpu_custom_call.1} parent=1 // pred_fallthru
      _
    // Predicated region
    $region50: #{tpu_custom_call.1} parent=1 // pred_check
      _
    $region51: #{tpu_custom_call.1} parent=1 // pred_check_branch
      %545 = sbr.rel (0) target = $region53
    $region52: #{tpu_custom_call.1} parent=1 // pred_region
      %546 = dma.done [#allocation4], 768
    $region53: #{tpu_custom_call.1} parent=1 // pred_fallthru
      _
    %547 = vsyncpa [#allocation3], 1
    %548 = vsyncpa [#allocation6], 1
    %549 = vsyncpa [#allocation9], 1
    %550 = vsyncpa [#allocation4], 1

</llo_original>
